<compile_context>
chip_gen: v7x
topology: tpu7x:2x2x1
jax: 0.10.0
libtpu: 0.0.40
codegen_flags: <defaults>
</compile_context>

<pallas_src>
import jax
import jax.numpy as jnp
from jax.experimental import pallas as pl
from jax.experimental.pallas import tpu as pltpu


def rnn_kernel(x_ref, wax_ref, waa_ref, b_ref, out_ref):
    """x_ref: (S*B, E) time-major-flattened inputs, wax_ref: (E, H),
    waa_ref: (H, H), b_ref: (1, H), out_ref: (S, B, H)."""
    S, B, H = out_ref.shape

    # Hoisted input projection for ALL timesteps in one MXU GEMM, bias folded.
    xw = (
        jnp.dot(x_ref[...], wax_ref[...], preferred_element_type=jnp.float32)
        + b_ref[...]
    )  # (S*B, H)

    waa = waa_ref[...]  # resident weights, loaded once

    # Serial recurrence over the (small, static) time axis, fully unrolled.
    a = jnp.zeros((B, H), dtype=jnp.float32)
    for t in range(S):
        a = jnp.tanh(
            xw[t * B:(t + 1) * B, :]
            + jnp.dot(a, waa, preferred_element_type=jnp.float32)
        )
        out_ref[t] = a.astype(out_ref.dtype)


def text_rnn2_forward(X, W_ax, W_aa, b_a):
    """X: (batch, seq, emb). W_ax: (hidden, emb), W_aa: (hidden, hidden),
    b_a: (hidden,)  -- PyTorch nn.Linear weight conventions."""
    B, S, E = X.shape
    H = W_ax.shape[0]

    # Time-major, flattened to (S*B, E) so the input projection is one GEMM.
    x_tm = jnp.transpose(X, (1, 0, 2)).reshape(S * B, E)
    wax_t = jnp.transpose(W_ax, (1, 0))  # (E, H)
    waa_t = jnp.transpose(W_aa, (1, 0))  # (H, H)
    b2d = b_a.reshape(1, H)              # (1, H)

    outputs = pl.pallas_call(
        rnn_kernel,
        out_shape=jax.ShapeDtypeStruct((S, B, H), X.dtype),
        grid_spec=pltpu.PrefetchScalarGridSpec(
            num_scalar_prefetch=0,
            grid=(1,),  # single invocation: whole problem resident in VMEM
            in_specs=[
                pl.BlockSpec((S * B, E), lambda i: (0, 0)),  # flattened X
                pl.BlockSpec((E, H), lambda i: (0, 0)),      # W_ax^T
                pl.BlockSpec((H, H), lambda i: (0, 0)),      # W_aa^T
                pl.BlockSpec((1, H), lambda i: (0, 0)),      # b_a
            ],
            out_specs=pl.BlockSpec((S, B, H), lambda i: (0, 0, 0)),
        ),
        compiler_params=pltpu.CompilerParams(
            dimension_semantics=("arbitrary",),
        ),
    )(x_tm, wax_t, waa_t, b2d)

    hidden = outputs[S - 1]  # zero-cost slice in XLA; identical to last a_n
    return outputs, hidden


def text_rnn2_reference(X, W_ax, W_aa, b_a):
    """Pure-JAX reference matching the PyTorch forward exactly."""
    x_tm = jnp.transpose(X, (1, 0, 2))  # (seq, batch, emb)
    B = x_tm.shape[1]
    H = W_ax.shape[0]
    a0 = jnp.zeros((B, H), dtype=jnp.float32)

    def step(a, x):
        a_new = jnp.tanh(x @ W_ax.T + a @ W_aa.T + b_a)
        return a_new, a_new

    hidden, outs = jax.lax.scan(step, a0, x_tm)
    return outs, hidden


if __name__ == "__main__":
    # Small deterministic config (consistent with the module's forward):
    batch, seq, emb_size, n_hidden = 2, 8, 16, 32

    key = jax.random.PRNGKey(0)
    kx, kax, kaa = jax.random.split(key, 3)

    X = jax.random.normal(kx, (batch, seq, emb_size), dtype=jnp.float32)
    # nn.Linear(emb, hidden, bias=False).weight has shape (hidden, emb).
    W_ax = jax.random.normal(kax, (n_hidden, emb_size), dtype=jnp.float32) * 0.1
    W_aa = jax.random.normal(kaa, (n_hidden, n_hidden), dtype=jnp.float32) * 0.1
    b_a = jnp.ones((n_hidden,), dtype=jnp.float32)  # nn.Parameter(torch.ones)

    outs, hidden = jax.block_until_ready(text_rnn2_forward(X, W_ax, W_aa, b_a))

    outs_ref, hidden_ref = text_rnn2_reference(X, W_ax, W_aa, b_a)
    assert outs.shape == (seq, batch, n_hidden)
    assert hidden.shape == (batch, n_hidden)
    assert jnp.allclose(outs, outs_ref, atol=1e-5, rtol=1e-5)
    assert jnp.allclose(hidden, hidden_ref, atol=1e-5, rtol=1e-5)

    print("KERNEL_OK")
</pallas_src>

<mosaic_0001>
module attributes {stable_mosaic.version = 11 : i64} {
  func.func @rnn_kernel(%arg0: i32, %arg1: memref<16x16xf32, #tpu.memory_space<vmem>>, %arg2: memref<16x32xf32, #tpu.memory_space<vmem>>, %arg3: memref<32x32xf32, #tpu.memory_space<vmem>>, %arg4: memref<1x32xf32, #tpu.memory_space<vmem>>, %arg5: memref<8x2x32xf32, #tpu.memory_space<vmem>>) attributes {dimension_semantics = [#tpu.dimension_semantics<arbitrary>], iteration_bounds = array<i64: 1>, scalar_prefetch = 0 : i64, scratch_operands = 0 : i64, tpu.core_type = #tpu.core_type<tc>, window_params = [{pipeline_mode = #tpu.pipeline_mode<synchronous>, transform_indices = @transform_0, window_bounds = array<i64: 16, 16>}, {pipeline_mode = #tpu.pipeline_mode<synchronous>, transform_indices = @transform_1, window_bounds = array<i64: 16, 32>}, {pipeline_mode = #tpu.pipeline_mode<synchronous>, transform_indices = @transform_2, window_bounds = array<i64: 32, 32>}, {pipeline_mode = #tpu.pipeline_mode<synchronous>, transform_indices = @transform_3, window_bounds = array<i64: 1, 32>}, {pipeline_mode = #tpu.pipeline_mode<synchronous>, transform_indices = @transform_4, window_bounds = array<i64: 8, 2, 32>}]} {
    %c0 = arith.constant 0 : index
    %c0_0 = arith.constant 0 : index
    %0 = vector.load %arg1[%c0, %c0_0] : memref<16x16xf32, #tpu.memory_space<vmem>>, vector<16x16xf32>
    %c0_1 = arith.constant 0 : index
    %c0_2 = arith.constant 0 : index
    %1 = vector.load %arg2[%c0_1, %c0_2] : memref<16x32xf32, #tpu.memory_space<vmem>>, vector<16x32xf32>
    %cst = arith.constant dense<0.000000e+00> : vector<16x32xf32>
    %2 = tpu.matmul %0, %1, %cst {dimension_numbers = #tpu.dot_dimension_numbers<[1], [0], [0], [1], [0, 0, 1, 1], [], []>} : vector<16x16xf32>, vector<16x32xf32>, vector<16x32xf32> -> vector<16x32xf32>
    %c0_3 = arith.constant 0 : index
    %c0_4 = arith.constant 0 : index
    %3 = vector.load %arg4[%c0_3, %c0_4] : memref<1x32xf32, #tpu.memory_space<vmem>>, vector<1x32xf32>
    %4 = vector.broadcast %3 : vector<1x32xf32> to vector<16x32xf32>
    %5 = arith.addf %2, %4 : vector<16x32xf32>
    %c0_5 = arith.constant 0 : index
    %c0_6 = arith.constant 0 : index
    %6 = vector.load %arg3[%c0_5, %c0_6] : memref<32x32xf32, #tpu.memory_space<vmem>>, vector<32x32xf32>
    %cst_7 = arith.constant 0.000000e+00 : f32
    %7 = vector.broadcast %cst_7 : f32 to vector<2x32xf32>
    %8 = vector.extract_strided_slice %5 {offsets = [0, 0], sizes = [2, 32], strides = [1, 1]} : vector<16x32xf32> to vector<2x32xf32>
    %cst_8 = arith.constant dense<0.000000e+00> : vector<2x32xf32>
    %9 = tpu.matmul %7, %6, %cst_8 {dimension_numbers = #tpu.dot_dimension_numbers<[1], [0], [0], [1], [0, 0, 1, 1], [], []>} : vector<2x32xf32>, vector<32x32xf32>, vector<2x32xf32> -> vector<2x32xf32>
    %10 = arith.addf %8, %9 : vector<2x32xf32>
    %11 = math.tanh %10 : vector<2x32xf32>
    %c0_9 = arith.constant 0 : index
    %c0_10 = arith.constant 0 : index
    %c0_11 = arith.constant 0 : index
    %12 = vector.load %arg5[%c0_9, %c0_10, %c0_11] : memref<8x2x32xf32, #tpu.memory_space<vmem>>, vector<1x2x32xf32>
    %13 = vector.shape_cast %12 : vector<1x2x32xf32> to vector<2x32xf32>
    %14 = vector.shape_cast %11 : vector<2x32xf32> to vector<1x2x32xf32>
    tpu.vector_store %arg5[%c0_9, %c0_10, %c0_11], %14 {strides = array<i32>} : memref<8x2x32xf32, #tpu.memory_space<vmem>>, vector<1x2x32xf32>,
    %15 = vector.extract_strided_slice %5 {offsets = [2, 0], sizes = [2, 32], strides = [1, 1]} : vector<16x32xf32> to vector<2x32xf32>
    %cst_12 = arith.constant dense<0.000000e+00> : vector<2x32xf32>
    %16 = tpu.matmul %11, %6, %cst_12 {dimension_numbers = #tpu.dot_dimension_numbers<[1], [0], [0], [1], [0, 0, 1, 1], [], []>} : vector<2x32xf32>, vector<32x32xf32>, vector<2x32xf32> -> vector<2x32xf32>
    %17 = arith.addf %15, %16 : vector<2x32xf32>
    %18 = math.tanh %17 : vector<2x32xf32>
    %c1 = arith.constant 1 : index
    %c0_13 = arith.constant 0 : index
    %c0_14 = arith.constant 0 : index
    %19 = vector.load %arg5[%c1, %c0_13, %c0_14] : memref<8x2x32xf32, #tpu.memory_space<vmem>>, vector<1x2x32xf32>
    %20 = vector.shape_cast %19 : vector<1x2x32xf32> to vector<2x32xf32>
    %21 = vector.shape_cast %18 : vector<2x32xf32> to vector<1x2x32xf32>
    tpu.vector_store %arg5[%c1, %c0_13, %c0_14], %21 {strides = array<i32>} : memref<8x2x32xf32, #tpu.memory_space<vmem>>, vector<1x2x32xf32>,
    %22 = vector.extract_strided_slice %5 {offsets = [4, 0], sizes = [2, 32], strides = [1, 1]} : vector<16x32xf32> to vector<2x32xf32>
    %cst_15 = arith.constant dense<0.000000e+00> : vector<2x32xf32>
    %23 = tpu.matmul %18, %6, %cst_15 {dimension_numbers = #tpu.dot_dimension_numbers<[1], [0], [0], [1], [0, 0, 1, 1], [], []>} : vector<2x32xf32>, vector<32x32xf32>, vector<2x32xf32> -> vector<2x32xf32>
    %24 = arith.addf %22, %23 : vector<2x32xf32>
    %25 = math.tanh %24 : vector<2x32xf32>
    %c2 = arith.constant 2 : index
    %c0_16 = arith.constant 0 : index
    %c0_17 = arith.constant 0 : index
    %26 = vector.load %arg5[%c2, %c0_16, %c0_17] : memref<8x2x32xf32, #tpu.memory_space<vmem>>, vector<1x2x32xf32>
    %27 = vector.shape_cast %26 : vector<1x2x32xf32> to vector<2x32xf32>
    %28 = vector.shape_cast %25 : vector<2x32xf32> to vector<1x2x32xf32>
    tpu.vector_store %arg5[%c2, %c0_16, %c0_17], %28 {strides = array<i32>} : memref<8x2x32xf32, #tpu.memory_space<vmem>>, vector<1x2x32xf32>,
    %29 = vector.extract_strided_slice %5 {offsets = [6, 0], sizes = [2, 32], strides = [1, 1]} : vector<16x32xf32> to vector<2x32xf32>
    %cst_18 = arith.constant dense<0.000000e+00> : vector<2x32xf32>
    %30 = tpu.matmul %25, %6, %cst_18 {dimension_numbers = #tpu.dot_dimension_numbers<[1], [0], [0], [1], [0, 0, 1, 1], [], []>} : vector<2x32xf32>, vector<32x32xf32>, vector<2x32xf32> -> vector<2x32xf32>
    %31 = arith.addf %29, %30 : vector<2x32xf32>
    %32 = math.tanh %31 : vector<2x32xf32>
    %c3 = arith.constant 3 : index
    %c0_19 = arith.constant 0 : index
    %c0_20 = arith.constant 0 : index
    %33 = vector.load %arg5[%c3, %c0_19, %c0_20] : memref<8x2x32xf32, #tpu.memory_space<vmem>>, vector<1x2x32xf32>
    %34 = vector.shape_cast %33 : vector<1x2x32xf32> to vector<2x32xf32>
    %35 = vector.shape_cast %32 : vector<2x32xf32> to vector<1x2x32xf32>
    tpu.vector_store %arg5[%c3, %c0_19, %c0_20], %35 {strides = array<i32>} : memref<8x2x32xf32, #tpu.memory_space<vmem>>, vector<1x2x32xf32>,
    %36 = vector.extract_strided_slice %5 {offsets = [8, 0], sizes = [2, 32], strides = [1, 1]} : vector<16x32xf32> to vector<2x32xf32>
    %cst_21 = arith.constant dense<0.000000e+00> : vector<2x32xf32>
    %37 = tpu.matmul %32, %6, %cst_21 {dimension_numbers = #tpu.dot_dimension_numbers<[1], [0], [0], [1], [0, 0, 1, 1], [], []>} : vector<2x32xf32>, vector<32x32xf32>, vector<2x32xf32> -> vector<2x32xf32>
    %38 = arith.addf %36, %37 : vector<2x32xf32>
    %39 = math.tanh %38 : vector<2x32xf32>
    %c4 = arith.constant 4 : index
    %c0_22 = arith.constant 0 : index
    %c0_23 = arith.constant 0 : index
    %40 = vector.load %arg5[%c4, %c0_22, %c0_23] : memref<8x2x32xf32, #tpu.memory_space<vmem>>, vector<1x2x32xf32>
    %41 = vector.shape_cast %40 : vector<1x2x32xf32> to vector<2x32xf32>
    %42 = vector.shape_cast %39 : vector<2x32xf32> to vector<1x2x32xf32>
    tpu.vector_store %arg5[%c4, %c0_22, %c0_23], %42 {strides = array<i32>} : memref<8x2x32xf32, #tpu.memory_space<vmem>>, vector<1x2x32xf32>,
    %43 = vector.extract_strided_slice %5 {offsets = [10, 0], sizes = [2, 32], strides = [1, 1]} : vector<16x32xf32> to vector<2x32xf32>
    %cst_24 = arith.constant dense<0.000000e+00> : vector<2x32xf32>
    %44 = tpu.matmul %39, %6, %cst_24 {dimension_numbers = #tpu.dot_dimension_numbers<[1], [0], [0], [1], [0, 0, 1, 1], [], []>} : vector<2x32xf32>, vector<32x32xf32>, vector<2x32xf32> -> vector<2x32xf32>
    %45 = arith.addf %43, %44 : vector<2x32xf32>
    %46 = math.tanh %45 : vector<2x32xf32>
    %c5 = arith.constant 5 : index
    %c0_25 = arith.constant 0 : index
    %c0_26 = arith.constant 0 : index
    %47 = vector.load %arg5[%c5, %c0_25, %c0_26] : memref<8x2x32xf32, #tpu.memory_space<vmem>>, vector<1x2x32xf32>
    %48 = vector.shape_cast %47 : vector<1x2x32xf32> to vector<2x32xf32>
    %49 = vector.shape_cast %46 : vector<2x32xf32> to vector<1x2x32xf32>
    tpu.vector_store %arg5[%c5, %c0_25, %c0_26], %49 {strides = array<i32>} : memref<8x2x32xf32, #tpu.memory_space<vmem>>, vector<1x2x32xf32>,
    %50 = vector.extract_strided_slice %5 {offsets = [12, 0], sizes = [2, 32], strides = [1, 1]} : vector<16x32xf32> to vector<2x32xf32>
    %cst_27 = arith.constant dense<0.000000e+00> : vector<2x32xf32>
    %51 = tpu.matmul %46, %6, %cst_27 {dimension_numbers = #tpu.dot_dimension_numbers<[1], [0], [0], [1], [0, 0, 1, 1], [], []>} : vector<2x32xf32>, vector<32x32xf32>, vector<2x32xf32> -> vector<2x32xf32>
    %52 = arith.addf %50, %51 : vector<2x32xf32>
    %53 = math.tanh %52 : vector<2x32xf32>
    %c6 = arith.constant 6 : index
    %c0_28 = arith.constant 0 : index
    %c0_29 = arith.constant 0 : index
    %54 = vector.load %arg5[%c6, %c0_28, %c0_29] : memref<8x2x32xf32, #tpu.memory_space<vmem>>, vector<1x2x32xf32>
    %55 = vector.shape_cast %54 : vector<1x2x32xf32> to vector<2x32xf32>
    %56 = vector.shape_cast %53 : vector<2x32xf32> to vector<1x2x32xf32>
    tpu.vector_store %arg5[%c6, %c0_28, %c0_29], %56 {strides = array<i32>} : memref<8x2x32xf32, #tpu.memory_space<vmem>>, vector<1x2x32xf32>,
    %57 = vector.extract_strided_slice %5 {offsets = [14, 0], sizes = [2, 32], strides = [1, 1]} : vector<16x32xf32> to vector<2x32xf32>
    %cst_30 = arith.constant dense<0.000000e+00> : vector<2x32xf32>
    %58 = tpu.matmul %53, %6, %cst_30 {dimension_numbers = #tpu.dot_dimension_numbers<[1], [0], [0], [1], [0, 0, 1, 1], [], []>} : vector<2x32xf32>, vector<32x32xf32>, vector<2x32xf32> -> vector<2x32xf32>
    %59 = arith.addf %57, %58 : vector<2x32xf32>
    %60 = math.tanh %59 : vector<2x32xf32>
    %c7 = arith.constant 7 : index
    %c0_31 = arith.constant 0 : index
    %c0_32 = arith.constant 0 : index
    %61 = vector.load %arg5[%c7, %c0_31, %c0_32] : memref<8x2x32xf32, #tpu.memory_space<vmem>>, vector<1x2x32xf32>
    %62 = vector.shape_cast %61 : vector<1x2x32xf32> to vector<2x32xf32>
    %63 = vector.shape_cast %60 : vector<2x32xf32> to vector<1x2x32xf32>
    tpu.vector_store %arg5[%c7, %c0_31, %c0_32], %63 {strides = array<i32>} : memref<8x2x32xf32, #tpu.memory_space<vmem>>, vector<1x2x32xf32>,
    return
  }
  func.func @transform_0(%arg0: i32) -> (i32, i32) {
    %c0_i32 = arith.constant 0 : i32
    %c0_i32_0 = arith.constant 0 : i32
    %c0_i32_1 = arith.constant 0 : i32
    return %c0_i32, %c0_i32_0 : i32, i32
  }
  func.func @transform_1(%arg0: i32) -> (i32, i32) {
    %c0_i32 = arith.constant 0 : i32
    %c0_i32_0 = arith.constant 0 : i32
    %c0_i32_1 = arith.constant 0 : i32
    return %c0_i32, %c0_i32_0 : i32, i32
  }
  func.func @transform_2(%arg0: i32) -> (i32, i32) {
    %c0_i32 = arith.constant 0 : i32
    %c0_i32_0 = arith.constant 0 : i32
    %c0_i32_1 = arith.constant 0 : i32
    return %c0_i32, %c0_i32_0 : i32, i32
  }
  func.func @transform_3(%arg0: i32) -> (i32, i32) {
    %c0_i32 = arith.constant 0 : i32
    %c0_i32_0 = arith.constant 0 : i32
    %c0_i32_1 = arith.constant 0 : i32
    return %c0_i32, %c0_i32_0 : i32, i32
  }
  func.func @transform_4(%arg0: i32) -> (i32, i32, i32) {
    %c0_i32 = arith.constant 0 : i32
    %c0_i32_0 = arith.constant 0 : i32
    %c0_i32_1 = arith.constant 0 : i32
    %c0_i32_2 = arith.constant 0 : i32
    return %c0_i32, %c0_i32_0, %c0_i32_1 : i32, i32, i32
  }
}

</mosaic_0001>

<llo_original>
// kernel: tpu_custom_call.1
$region0: #{tpu_custom_call.1}
  #allocation0 [shape = 'u32[]', space=smem, size = 0x4, offset = 0x4, fixed_abs, tag = 'smem constant byte address 0x4 - core index']
  #allocation1 [shape = 'u32[144,128]{1,0:T(1,128)}', space=vmem, size = 0x12000, scoped, tag = 'internal scratch']
  %s0 = inlined_call_operand.hbm [shape: f32[16,16], index: 0, kind: input, shape index: {}]
  %s1 = inlined_call_operand.hbm [shape: f32[16,32], index: 1, kind: input, shape index: {}]
  %s2 = inlined_call_operand.hbm [shape: f32[32,32], index: 2, kind: input, shape index: {}]
  %s3 = inlined_call_operand.vmem [shape: f32[1,32], index: 3, kind: input, shape index: {}]
  %s4 = inlined_call_operand.hbm [shape: f32[8,2,32], index: 4, kind: output, shape index: {}]
  %s5 = sld [smem:[#allocation0]]
  $region38: #{tpu_custom_call.1} parent=0
    _
  %s7 = ssub.s32 1, %s5
  %s8 = scalar_select 0, %s7, %s5
  $region1: #{tpu_custom_call.1} parent=0
    #allocation2 [shape = 'u8[8192]{0}', space=vmem, size = 0x2000, scoped, tag = 'input window, operand 0, single buffered']
    #allocation3 [shape = 's32[1]{0}', space=sflag, size = 0x4, scoped, tag = 'scoped memory for tpu_custom_call.1']
    #allocation4 [shape = 's32[1]{0}', space=sflag, size = 0x4, scoped, tag = 'scoped memory for tpu_custom_call.1']
    #allocation5 [shape = 'u8[8192]{0}', space=vmem, size = 0x2000, scoped, tag = 'input window, operand 1, single buffered']
    #allocation6 [shape = 's32[1]{0}', space=sflag, size = 0x4, scoped, tag = 'scoped memory for tpu_custom_call.1']
    #allocation7 [shape = 'u8[16384]{0}', space=vmem, size = 0x4000, scoped, tag = 'input window, operand 2, single buffered']
    #allocation8 [shape = 'u8[8192]{0}', space=vmem, size = 0x2000, scoped, tag = 'output window, operand 0, single buffered']
    %9 = vsyncpa [#allocation3], 0
    %10 = vsyncpa [#allocation6], 0
    %11 = vsyncpa [#allocation4], 0
    // Predicated region
    $region2: #{tpu_custom_call.1} parent=1 // pred_check
      _
    $region3: #{tpu_custom_call.1} parent=1 // pred_check_branch
      %13 = sbr.rel (0) target = $region5
    $region4: #{tpu_custom_call.1} parent=1 // pred_region
      %s15 = ssub.s32 256, 256
      %16 = vsyncadd [#allocation3], %s15
      %s17 = sshll.u32 [#allocation2], 4
      %s18 = int_to_ptr.vmem [resolvable:$true] %s17
      %23 = dma.hbm_to_vmem [thread:$0]  %s0, 256, %s18, [#allocation3], 128, 128, 8
    $region5: #{tpu_custom_call.1} parent=1 // pred_fallthru
      _
    // Predicated region
    $region6: #{tpu_custom_call.1} parent=1 // pred_check
      _
    $region7: #{tpu_custom_call.1} parent=1 // pred_check_branch
      %25 = sbr.rel (0) target = $region9
    $region8: #{tpu_custom_call.1} parent=1 // pred_region
      %s27 = ssub.s32 256, 256
      %28 = vsyncadd [#allocation6], %s27
      %s29 = sshll.u32 [#allocation5], 4
      %s30 = int_to_ptr.vmem [resolvable:$true] %s29
      %35 = dma.hbm_to_vmem [thread:$0]  %s1, 256, %s30, [#allocation6], 128, 128, 8
    $region9: #{tpu_custom_call.1} parent=1 // pred_fallthru
      _
    // Predicated region
    $region10: #{tpu_custom_call.1} parent=1 // pred_check
      _
    $region11: #{tpu_custom_call.1} parent=1 // pred_check_branch
      %37 = sbr.rel (0) target = $region13
    $region12: #{tpu_custom_call.1} parent=1 // pred_region
      %s39 = ssub.s32 512, 512
      %40 = vsyncadd [#allocation6], %s39
      %s41 = sshll.u32 [#allocation7], 4
      %s42 = int_to_ptr.vmem [resolvable:$true] %s41
      %47 = dma.hbm_to_vmem [thread:$0]  %s2, 512, %s42, [#allocation6], 128, 128, 8
    $region13: #{tpu_custom_call.1} parent=1 // pred_fallthru
      _
    // Predicated region
    $region14: #{tpu_custom_call.1} parent=1 // pred_check
      _
    $region15: #{tpu_custom_call.1} parent=1 // pred_check_branch
      %49 = sbr.rel (0) target = $region17
    $region16: #{tpu_custom_call.1} parent=1 // pred_region
      _
    $region17: #{tpu_custom_call.1} parent=1 // pred_fallthru
      _
    // Predicated region
    $region18: #{tpu_custom_call.1} parent=1 // pred_check
      _
    $region19: #{tpu_custom_call.1} parent=1 // pred_check_branch
      %51 = sbr.rel (0) target = $region21
    $region20: #{tpu_custom_call.1} parent=1 // pred_region
      %52 = dma.done [#allocation3], 256
    $region21: #{tpu_custom_call.1} parent=1 // pred_fallthru
      _
    // Predicated region
    $region22: #{tpu_custom_call.1} parent=1 // pred_check
      _
    $region23: #{tpu_custom_call.1} parent=1 // pred_check_branch
      %54 = sbr.rel (0) target = $region25
    $region24: #{tpu_custom_call.1} parent=1 // pred_region
      %55 = dma.done [#allocation6], 256
    $region25: #{tpu_custom_call.1} parent=1 // pred_fallthru
      _
    // Predicated region
    $region26: #{tpu_custom_call.1} parent=1 // pred_check
      _
    $region27: #{tpu_custom_call.1} parent=1 // pred_check_branch
      %57 = sbr.rel (0) target = $region29
    $region28: #{tpu_custom_call.1} parent=1 // pred_region
      %58 = dma.done [#allocation6], 512
    $region29: #{tpu_custom_call.1} parent=1 // pred_fallthru
      _
    %v59 = vld [vmem:[#allocation2] sm:$0xff]
    %v60 = vld [vmem:[#allocation2 + $0x8] sm:$0xff]
    %v61 = vld [vmem:[#allocation5] sm:$0xff]
    %v62 = vld [vmem:[#allocation5 + $0x8] sm:$0xff]
    %v63 = vld [vmem:[%s3] sm:$0x1]
    %v65 = vlaneseq
    %v66 = vshrl.u32 %v65, 7
    %v67 = vsub.s32 0, %v66
    %v68 = vrot.slane %v63, %v67
    %vm70 = vcmask 130048
    %v72 = vsel %vm70, %v59, 0
    %v75 = vsel %vm70, %v60, 0
    %77 = vmatprep.subr.mxu0 0.0
    %78 = vmatpush1.msra.mxu0 %v61
    %79 = vmatprep.subr.mxu0 0.0
    %80 = vmatpush1.msra.mxu0 %v62
    %81 = vmatprep.subr.mxu0 0.0
    %82 = vmatpush1.msra.mxu0 0.0
    %83 = vmatprep.subr.mxu0 0.0
    %84 = vmatpush1.msra.mxu0 0.0
    %85 = vmatprep.subr.mxu0 0.0
    %86 = vmatpush1.msra.mxu0 0.0
    %87 = vmatprep.subr.mxu0 0.0
    %88 = vmatpush1.msra.mxu0 0.0
    %89 = vmatprep.subr.mxu0 0.0
    %90 = vmatpush1.msra.mxu0 0.0
    %91 = vmatprep.subr.mxu0 0.0
    %92 = vmatpush1.msra.mxu0 0.0
    %93 = vmatprep.subr.mxu0 0.0
    %94 = vmatpush1.msra.mxu0 0.0
    %95 = vmatprep.subr.mxu0 0.0
    %96 = vmatpush1.msra.mxu0 0.0
    %97 = vmatprep.subr.mxu0 0.0
    %98 = vmatpush1.msra.mxu0 0.0
    %99 = vmatprep.subr.mxu0 0.0
    %100 = vmatpush1.msra.mxu0 0.0
    %101 = vmatprep.subr.mxu0 0.0
    %102 = vmatpush1.msra.mxu0 0.0
    %103 = vmatprep.subr.mxu0 0.0
    %104 = vmatpush1.msra.mxu0 0.0
    %105 = vmatprep.subr.mxu0 0.0
    %106 = vmatpush1.msra.mxu0 0.0
    %107 = vmatprep.subr.mxu0 0.0
    %108 = vmatpush1.msra.mxu0 0.0
    %109 = vmatprep.subr.mxu0 0.0
    %110 = vmatpush1.msra.mxu0 0.0
    %111 = vmatprep.subr.mxu0 0.0
    %112 = vmatpush1.msra.mxu0 0.0
    %113 = vmatprep.subr.mxu0 0.0
    %114 = vmatpush1.msra.mxu0 0.0
    %115 = vmatprep.subr.mxu0 0.0
    %116 = vmatpush1.msra.mxu0 0.0
    %117 = vmatprep.subr.mxu0 0.0
    %118 = vmatpush1.msra.mxu0 0.0
    %119 = vmatprep.subr.mxu0 0.0
    %120 = vmatpush1.msra.mxu0 0.0
    %121 = vmatprep.subr.mxu0 0.0
    %122 = vmatpush1.msra.mxu0 0.0
    %123 = vmatprep.subr.mxu0 0.0
    %124 = vmatpush1.msra.mxu0 0.0
    %125 = vmatprep.subr.mxu0 0.0
    %126 = vmatpush1.msra.mxu0 0.0
    %127 = vmatprep.subr.mxu0 0.0
    %128 = vmatpush1.msra.mxu0 0.0
    %129 = vmatprep.subr.mxu0 0.0
    %130 = vmatpush1.msra.mxu0 0.0
    %131 = vmatprep.subr.mxu0 0.0
    %132 = vmatpush1.msra.mxu0 0.0
    %133 = vmatprep.subr.mxu0 0.0
    %134 = vmatpush1.msra.mxu0 0.0
    %135 = vmatprep.subr.mxu0 0.0
    %136 = vmatpush1.msra.mxu0 0.0
    %137 = vmatprep.subr.mxu0 0.0
    %138 = vmatpush1.msra.mxu0 0.0
    %139 = vmatprep.subr.mxu0 0.0
    %140 = vmatpush1.msra.mxu0 0.0
    %141 = vmatprep.mubr.f32.mxu0 0.0
    %142 = vmatmul.mubr.f32.gmra.mrb[0].mxu0 %v72
    %v143 = vpop.f32.mrb[0].mxu0
    %v144 = vadd.f32 %v68, %v143
    %v145 = vpop.f32.mrb[0].mxu0
    %146 = vmatprep.mubr.f32.mxu0 0.0
    %147 = vmatmul.mubr.f32.gmra.mrb[0].mxu0 %v75
    %v148 = vpop.f32.mrb[0].mxu0
    %v149 = vadd.f32 %v68, %v148
    %v150 = vpop.f32.mrb[0].mxu0
    %151 = vdwg.mxu0
    %v152 = vld [vmem:[#allocation7] sm:$0xff]
    %v153 = vld [vmem:[#allocation7 + $0x8] sm:$0xff]
    %v154 = vld [vmem:[#allocation7 + $0x10] sm:$0xff]
    %v155 = vld [vmem:[#allocation7 + $0x18] sm:$0xff]
    %vm156 = vcmask 261120
    %v158 = vsel %vm156, 0.0, 0
    %160 = vmatprep.subr.mxu0 0.0
    %161 = vmatpush1.msra.mxu0 %v152
    %162 = vmatprep.subr.mxu0 0.0
    %163 = vmatpush1.msra.mxu0 %v153
    %164 = vmatprep.subr.mxu0 0.0
    %165 = vmatpush1.msra.mxu0 %v154
    %166 = vmatprep.subr.mxu0 0.0
    %167 = vmatpush1.msra.mxu0 %v155
    %168 = vmatprep.subr.mxu0 0.0
    %169 = vmatpush1.msra.mxu0 0.0
    %170 = vmatprep.subr.mxu0 0.0
    %171 = vmatpush1.msra.mxu0 0.0
    %172 = vmatprep.subr.mxu0 0.0
    %173 = vmatpush1.msra.mxu0 0.0
    %174 = vmatprep.subr.mxu0 0.0
    %175 = vmatpush1.msra.mxu0 0.0
    %176 = vmatprep.subr.mxu0 0.0
    %177 = vmatpush1.msra.mxu0 0.0
    %178 = vmatprep.subr.mxu0 0.0
    %179 = vmatpush1.msra.mxu0 0.0
    %180 = vmatprep.subr.mxu0 0.0
    %181 = vmatpush1.msra.mxu0 0.0
    %182 = vmatprep.subr.mxu0 0.0
    %183 = vmatpush1.msra.mxu0 0.0
    %184 = vmatprep.subr.mxu0 0.0
    %185 = vmatpush1.msra.mxu0 0.0
    %186 = vmatprep.subr.mxu0 0.0
    %187 = vmatpush1.msra.mxu0 0.0
    %188 = vmatprep.subr.mxu0 0.0
    %189 = vmatpush1.msra.mxu0 0.0
    %190 = vmatprep.subr.mxu0 0.0
    %191 = vmatpush1.msra.mxu0 0.0
    %192 = vmatprep.subr.mxu0 0.0
    %193 = vmatpush1.msra.mxu0 0.0
    %194 = vmatprep.subr.mxu0 0.0
    %195 = vmatpush1.msra.mxu0 0.0
    %196 = vmatprep.subr.mxu0 0.0
    %197 = vmatpush1.msra.mxu0 0.0
    %198 = vmatprep.subr.mxu0 0.0
    %199 = vmatpush1.msra.mxu0 0.0
    %200 = vmatprep.subr.mxu0 0.0
    %201 = vmatpush1.msra.mxu0 0.0
    %202 = vmatprep.subr.mxu0 0.0
    %203 = vmatpush1.msra.mxu0 0.0
    %204 = vmatprep.subr.mxu0 0.0
    %205 = vmatpush1.msra.mxu0 0.0
    %206 = vmatprep.subr.mxu0 0.0
    %207 = vmatpush1.msra.mxu0 0.0
    %208 = vmatprep.subr.mxu0 0.0
    %209 = vmatpush1.msra.mxu0 0.0
    %210 = vmatprep.subr.mxu0 0.0
    %211 = vmatpush1.msra.mxu0 0.0
    %212 = vmatprep.subr.mxu0 0.0
    %213 = vmatpush1.msra.mxu0 0.0
    %214 = vmatprep.subr.mxu0 0.0
    %215 = vmatpush1.msra.mxu0 0.0
    %216 = vmatprep.subr.mxu0 0.0
    %217 = vmatpush1.msra.mxu0 0.0
    %218 = vmatprep.subr.mxu0 0.0
    %219 = vmatpush1.msra.mxu0 0.0
    %220 = vmatprep.subr.mxu0 0.0
    %221 = vmatpush1.msra.mxu0 0.0
    %222 = vmatprep.subr.mxu0 0.0
    %223 = vmatpush1.msra.mxu0 0.0
    %224 = vmatprep.mubr.f32.mxu0 0.0
    %225 = vmatmul.mubr.f32.gmra.mrb[0].mxu0 %v158
    %v226 = vpop.f32.mrb[0].mxu0
    %v227 = vadd.f32 0.0, %v226
    %v228 = vpop.f32.mrb[0].mxu0
    %229 = vdwg.mxu0
    %v230 = vadd.f32 %v144, %v227
    %v231 = vtanh.pop %v230
    %vm232 = vcmask 254976
    %233 = vst.msk [vmem:[#allocation8] sm:$0x3] %vm232, %v231
    %v235 = vsel %vm156, %v231, 0
    %237 = vmatprep.subr.mxu0 0.0
    %238 = vmatpush1.msra.mxu0 %v152
    %239 = vmatprep.subr.mxu0 0.0
    %240 = vmatpush1.msra.mxu0 %v153
    %241 = vmatprep.subr.mxu0 0.0
    %242 = vmatpush1.msra.mxu0 %v154
    %243 = vmatprep.subr.mxu0 0.0
    %244 = vmatpush1.msra.mxu0 %v155
    %245 = vmatprep.subr.mxu0 0.0
    %246 = vmatpush1.msra.mxu0 0.0
    %247 = vmatprep.subr.mxu0 0.0
    %248 = vmatpush1.msra.mxu0 0.0
    %249 = vmatprep.subr.mxu0 0.0
    %250 = vmatpush1.msra.mxu0 0.0
    %251 = vmatprep.subr.mxu0 0.0
    %252 = vmatpush1.msra.mxu0 0.0
    %253 = vmatprep.subr.mxu0 0.0
    %254 = vmatpush1.msra.mxu0 0.0
    %255 = vmatprep.subr.mxu0 0.0
    %256 = vmatpush1.msra.mxu0 0.0
    %257 = vmatprep.subr.mxu0 0.0
    %258 = vmatpush1.msra.mxu0 0.0
    %259 = vmatprep.subr.mxu0 0.0
    %260 = vmatpush1.msra.mxu0 0.0
    %261 = vmatprep.subr.mxu0 0.0
    %262 = vmatpush1.msra.mxu0 0.0
    %263 = vmatprep.subr.mxu0 0.0
    %264 = vmatpush1.msra.mxu0 0.0
    %265 = vmatprep.subr.mxu0 0.0
    %266 = vmatpush1.msra.mxu0 0.0
    %267 = vmatprep.subr.mxu0 0.0
    %268 = vmatpush1.msra.mxu0 0.0
    %269 = vmatprep.subr.mxu0 0.0
    %270 = vmatpush1.msra.mxu0 0.0
    %271 = vmatprep.subr.mxu0 0.0
    %272 = vmatpush1.msra.mxu0 0.0
    %273 = vmatprep.subr.mxu0 0.0
    %274 = vmatpush1.msra.mxu0 0.0
    %275 = vmatprep.subr.mxu0 0.0
    %276 = vmatpush1.msra.mxu0 0.0
    %277 = vmatprep.subr.mxu0 0.0
    %278 = vmatpush1.msra.mxu0 0.0
    %279 = vmatprep.subr.mxu0 0.0
    %280 = vmatpush1.msra.mxu0 0.0
    %281 = vmatprep.subr.mxu0 0.0
    %282 = vmatpush1.msra.mxu0 0.0
    %283 = vmatprep.subr.mxu0 0.0
    %284 = vmatpush1.msra.mxu0 0.0
    %285 = vmatprep.subr.mxu0 0.0
    %286 = vmatpush1.msra.mxu0 0.0
    %287 = vmatprep.subr.mxu0 0.0
    %288 = vmatpush1.msra.mxu0 0.0
    %289 = vmatprep.subr.mxu0 0.0
    %290 = vmatpush1.msra.mxu0 0.0
    %291 = vmatprep.subr.mxu0 0.0
    %292 = vmatpush1.msra.mxu0 0.0
    %293 = vmatprep.subr.mxu0 0.0
    %294 = vmatpush1.msra.mxu0 0.0
    %295 = vmatprep.subr.mxu0 0.0
    %296 = vmatpush1.msra.mxu0 0.0
    %297 = vmatprep.subr.mxu0 0.0
    %298 = vmatpush1.msra.mxu0 0.0
    %299 = vmatprep.subr.mxu0 0.0
    %300 = vmatpush1.msra.mxu0 0.0
    %301 = vmatprep.mubr.f32.mxu0 0.0
    %302 = vmatmul.mubr.f32.gmra.mrb[0].mxu0 %v235
    %v303 = vpop.f32.mrb[0].mxu0
    %v304 = vadd.f32 0.0, %v303
    %v305 = vpop.f32.mrb[0].mxu0
    %306 = vdwg.mxu0
    %v308 = vrot.slane %v304, 6
    %v310 = vadd.f32 %v144, %v308
    %v311 = vtanh.pop %v310
    %s312 = scalar_lea.vmem [#allocation8], 2
    %vm313 = vcmask 257026
    %314 = vst.msk [vmem:[%s312 - $0x2] sm:$0xc] %vm313, %v311
    %v316 = vrot.slane %v311, 2
    %v317 = vsel %vm156, %v316, 0
    %319 = vmatprep.subr.mxu0 0.0
    %320 = vmatpush1.msra.mxu0 %v152
    %321 = vmatprep.subr.mxu0 0.0
    %322 = vmatpush1.msra.mxu0 %v153
    %323 = vmatprep.subr.mxu0 0.0
    %324 = vmatpush1.msra.mxu0 %v154
    %325 = vmatprep.subr.mxu0 0.0
    %326 = vmatpush1.msra.mxu0 %v155
    %327 = vmatprep.subr.mxu0 0.0
    %328 = vmatpush1.msra.mxu0 0.0
    %329 = vmatprep.subr.mxu0 0.0
    %330 = vmatpush1.msra.mxu0 0.0
    %331 = vmatprep.subr.mxu0 0.0
    %332 = vmatpush1.msra.mxu0 0.0
    %333 = vmatprep.subr.mxu0 0.0
    %334 = vmatpush1.msra.mxu0 0.0
    %335 = vmatprep.subr.mxu0 0.0
    %336 = vmatpush1.msra.mxu0 0.0
    %337 = vmatprep.subr.mxu0 0.0
    %338 = vmatpush1.msra.mxu0 0.0
    %339 = vmatprep.subr.mxu0 0.0
    %340 = vmatpush1.msra.mxu0 0.0
    %341 = vmatprep.subr.mxu0 0.0
    %342 = vmatpush1.msra.mxu0 0.0
    %343 = vmatprep.subr.mxu0 0.0
    %344 = vmatpush1.msra.mxu0 0.0
    %345 = vmatprep.subr.mxu0 0.0
    %346 = vmatpush1.msra.mxu0 0.0
    %347 = vmatprep.subr.mxu0 0.0
    %348 = vmatpush1.msra.mxu0 0.0
    %349 = vmatprep.subr.mxu0 0.0
    %350 = vmatpush1.msra.mxu0 0.0
    %351 = vmatprep.subr.mxu0 0.0
    %352 = vmatpush1.msra.mxu0 0.0
    %353 = vmatprep.subr.mxu0 0.0
    %354 = vmatpush1.msra.mxu0 0.0
    %355 = vmatprep.subr.mxu0 0.0
    %356 = vmatpush1.msra.mxu0 0.0
    %357 = vmatprep.subr.mxu0 0.0
    %358 = vmatpush1.msra.mxu0 0.0
    %359 = vmatprep.subr.mxu0 0.0
    %360 = vmatpush1.msra.mxu0 0.0
    %361 = vmatprep.subr.mxu0 0.0
    %362 = vmatpush1.msra.mxu0 0.0
    %363 = vmatprep.subr.mxu0 0.0
    %364 = vmatpush1.msra.mxu0 0.0
    %365 = vmatprep.subr.mxu0 0.0
    %366 = vmatpush1.msra.mxu0 0.0
    %367 = vmatprep.subr.mxu0 0.0
    %368 = vmatpush1.msra.mxu0 0.0
    %369 = vmatprep.subr.mxu0 0.0
    %370 = vmatpush1.msra.mxu0 0.0
    %371 = vmatprep.subr.mxu0 0.0
    %372 = vmatpush1.msra.mxu0 0.0
    %373 = vmatprep.subr.mxu0 0.0
    %374 = vmatpush1.msra.mxu0 0.0
    %375 = vmatprep.subr.mxu0 0.0
    %376 = vmatpush1.msra.mxu0 0.0
    %377 = vmatprep.subr.mxu0 0.0
    %378 = vmatpush1.msra.mxu0 0.0
    %379 = vmatprep.subr.mxu0 0.0
    %380 = vmatpush1.msra.mxu0 0.0
    %381 = vmatprep.subr.mxu0 0.0
    %382 = vmatpush1.msra.mxu0 0.0
    %383 = vmatprep.mubr.f32.mxu0 0.0
    %384 = vmatmul.mubr.f32.gmra.mrb[0].mxu0 %v317
    %v385 = vpop.f32.mrb[0].mxu0
    %v386 = vadd.f32 0.0, %v385
    %v387 = vpop.f32.mrb[0].mxu0
    %388 = vdwg.mxu0
    %v390 = vrot.slane %v386, 4
    %v392 = vadd.f32 %v144, %v390
    %v393 = vtanh.pop %v392
    %s394 = scalar_lea.vmem [#allocation8], 4
    %vm395 = vcmask 259076
    %396 = vst.msk [vmem:[%s394 - $0x4] sm:$0x30] %vm395, %v393
    %v398 = vrot.slane %v393, 4
    %v399 = vsel %vm156, %v398, 0
    %401 = vmatprep.subr.mxu0 0.0
    %402 = vmatpush1.msra.mxu0 %v152
    %403 = vmatprep.subr.mxu0 0.0
    %404 = vmatpush1.msra.mxu0 %v153
    %405 = vmatprep.subr.mxu0 0.0
    %406 = vmatpush1.msra.mxu0 %v154
    %407 = vmatprep.subr.mxu0 0.0
    %408 = vmatpush1.msra.mxu0 %v155
    %409 = vmatprep.subr.mxu0 0.0
    %410 = vmatpush1.msra.mxu0 0.0
    %411 = vmatprep.subr.mxu0 0.0
    %412 = vmatpush1.msra.mxu0 0.0
    %413 = vmatprep.subr.mxu0 0.0
    %414 = vmatpush1.msra.mxu0 0.0
    %415 = vmatprep.subr.mxu0 0.0
    %416 = vmatpush1.msra.mxu0 0.0
    %417 = vmatprep.subr.mxu0 0.0
    %418 = vmatpush1.msra.mxu0 0.0
    %419 = vmatprep.subr.mxu0 0.0
    %420 = vmatpush1.msra.mxu0 0.0
    %421 = vmatprep.subr.mxu0 0.0
    %422 = vmatpush1.msra.mxu0 0.0
    %423 = vmatprep.subr.mxu0 0.0
    %424 = vmatpush1.msra.mxu0 0.0
    %425 = vmatprep.subr.mxu0 0.0
    %426 = vmatpush1.msra.mxu0 0.0
    %427 = vmatprep.subr.mxu0 0.0
    %428 = vmatpush1.msra.mxu0 0.0
    %429 = vmatprep.subr.mxu0 0.0
    %430 = vmatpush1.msra.mxu0 0.0
    %431 = vmatprep.subr.mxu0 0.0
    %432 = vmatpush1.msra.mxu0 0.0
    %433 = vmatprep.subr.mxu0 0.0
    %434 = vmatpush1.msra.mxu0 0.0
    %435 = vmatprep.subr.mxu0 0.0
    %436 = vmatpush1.msra.mxu0 0.0
    %437 = vmatprep.subr.mxu0 0.0
    %438 = vmatpush1.msra.mxu0 0.0
    %439 = vmatprep.subr.mxu0 0.0
    %440 = vmatpush1.msra.mxu0 0.0
    %441 = vmatprep.subr.mxu0 0.0
    %442 = vmatpush1.msra.mxu0 0.0
    %443 = vmatprep.subr.mxu0 0.0
    %444 = vmatpush1.msra.mxu0 0.0
    %445 = vmatprep.subr.mxu0 0.0
    %446 = vmatpush1.msra.mxu0 0.0
    %447 = vmatprep.subr.mxu0 0.0
    %448 = vmatpush1.msra.mxu0 0.0
    %449 = vmatprep.subr.mxu0 0.0
    %450 = vmatpush1.msra.mxu0 0.0
    %451 = vmatprep.subr.mxu0 0.0
    %452 = vmatpush1.msra.mxu0 0.0
    %453 = vmatprep.subr.mxu0 0.0
    %454 = vmatpush1.msra.mxu0 0.0
    %455 = vmatprep.subr.mxu0 0.0
    %456 = vmatpush1.msra.mxu0 0.0
    %457 = vmatprep.subr.mxu0 0.0
    %458 = vmatpush1.msra.mxu0 0.0
    %459 = vmatprep.subr.mxu0 0.0
    %460 = vmatpush1.msra.mxu0 0.0
    %461 = vmatprep.subr.mxu0 0.0
    %462 = vmatpush1.msra.mxu0 0.0
    %463 = vmatprep.subr.mxu0 0.0
    %464 = vmatpush1.msra.mxu0 0.0
    %465 = vmatprep.mubr.f32.mxu0 0.0
    %466 = vmatmul.mubr.f32.gmra.mrb[0].mxu0 %v399
    %v467 = vpop.f32.mrb[0].mxu0
    %v468 = vadd.f32 0.0, %v467
    %v469 = vpop.f32.mrb[0].mxu0
    %470 = vdwg.mxu0
    %v472 = vrot.slane %v468, 2
    %v474 = vadd.f32 %v144, %v472
    %v475 = vtanh.pop %v474
    %s476 = scalar_lea.vmem [#allocation8], 6
    %vm477 = vcmask 261126
    %478 = vst.msk [vmem:[%s476 - $0x6] sm:$0xc0] %vm477, %v475
    %v480 = vrot.slane %v475, 6
    %v481 = vsel %vm156, %v480, 0
    %483 = vmatprep.subr.mxu0 0.0
    %484 = vmatpush1.msra.mxu0 %v152
    %485 = vmatprep.subr.mxu0 0.0
    %486 = vmatpush1.msra.mxu0 %v153
    %487 = vmatprep.subr.mxu0 0.0
    %488 = vmatpush1.msra.mxu0 %v154
    %489 = vmatprep.subr.mxu0 0.0
    %490 = vmatpush1.msra.mxu0 %v155
    %491 = vmatprep.subr.mxu0 0.0
    %492 = vmatpush1.msra.mxu0 0.0
    %493 = vmatprep.subr.mxu0 0.0
    %494 = vmatpush1.msra.mxu0 0.0
    %495 = vmatprep.subr.mxu0 0.0
    %496 = vmatpush1.msra.mxu0 0.0
    %497 = vmatprep.subr.mxu0 0.0
    %498 = vmatpush1.msra.mxu0 0.0
    %499 = vmatprep.subr.mxu0 0.0
    %500 = vmatpush1.msra.mxu0 0.0
    %501 = vmatprep.subr.mxu0 0.0
    %502 = vmatpush1.msra.mxu0 0.0
    %503 = vmatprep.subr.mxu0 0.0
    %504 = vmatpush1.msra.mxu0 0.0
    %505 = vmatprep.subr.mxu0 0.0
    %506 = vmatpush1.msra.mxu0 0.0
    %507 = vmatprep.subr.mxu0 0.0
    %508 = vmatpush1.msra.mxu0 0.0
    %509 = vmatprep.subr.mxu0 0.0
    %510 = vmatpush1.msra.mxu0 0.0
    %511 = vmatprep.subr.mxu0 0.0
    %512 = vmatpush1.msra.mxu0 0.0
    %513 = vmatprep.subr.mxu0 0.0
    %514 = vmatpush1.msra.mxu0 0.0
    %515 = vmatprep.subr.mxu0 0.0
    %516 = vmatpush1.msra.mxu0 0.0
    %517 = vmatprep.subr.mxu0 0.0
    %518 = vmatpush1.msra.mxu0 0.0
    %519 = vmatprep.subr.mxu0 0.0
    %520 = vmatpush1.msra.mxu0 0.0
    %521 = vmatprep.subr.mxu0 0.0
    %522 = vmatpush1.msra.mxu0 0.0
    %523 = vmatprep.subr.mxu0 0.0
    %524 = vmatpush1.msra.mxu0 0.0
    %525 = vmatprep.subr.mxu0 0.0
    %526 = vmatpush1.msra.mxu0 0.0
    %527 = vmatprep.subr.mxu0 0.0
    %528 = vmatpush1.msra.mxu0 0.0
    %529 = vmatprep.subr.mxu0 0.0
    %530 = vmatpush1.msra.mxu0 0.0
    %531 = vmatprep.subr.mxu0 0.0
    %532 = vmatpush1.msra.mxu0 0.0
    %533 = vmatprep.subr.mxu0 0.0
    %534 = vmatpush1.msra.mxu0 0.0
    %535 = vmatprep.subr.mxu0 0.0
    %536 = vmatpush1.msra.mxu0 0.0
    %537 = vmatprep.subr.mxu0 0.0
    %538 = vmatpush1.msra.mxu0 0.0
    %539 = vmatprep.subr.mxu0 0.0
    %540 = vmatpush1.msra.mxu0 0.0
    %541 = vmatprep.subr.mxu0 0.0
    %542 = vmatpush1.msra.mxu0 0.0
    %543 = vmatprep.subr.mxu0 0.0
    %544 = vmatpush1.msra.mxu0 0.0
    %545 = vmatprep.subr.mxu0 0.0
    %546 = vmatpush1.msra.mxu0 0.0
    %547 = vmatprep.mubr.f32.mxu0 0.0
    %548 = vmatmul.mubr.f32.gmra.mrb[0].mxu0 %v481
    %v549 = vpop.f32.mrb[0].mxu0
    %v550 = vadd.f32 0.0, %v549
    %v551 = vpop.f32.mrb[0].mxu0
    %552 = vdwg.mxu0
    %v553 = vadd.f32 %v149, %v550
    %v554 = vtanh.pop %v553
    %s555 = scalar_lea.vmem [#allocation8], 8
    %556 = vst.msk [vmem:[%s555] sm:$0x3] %vm232, %v554
    %v558 = vsel %vm156, %v554, 0
    %560 = vmatprep.subr.mxu0 0.0
    %561 = vmatpush1.msra.mxu0 %v152
    %562 = vmatprep.subr.mxu0 0.0
    %563 = vmatpush1.msra.mxu0 %v153
    %564 = vmatprep.subr.mxu0 0.0
    %565 = vmatpush1.msra.mxu0 %v154
    %566 = vmatprep.subr.mxu0 0.0
    %567 = vmatpush1.msra.mxu0 %v155
    %568 = vmatprep.subr.mxu0 0.0
    %569 = vmatpush1.msra.mxu0 0.0
    %570 = vmatprep.subr.mxu0 0.0
    %571 = vmatpush1.msra.mxu0 0.0
    %572 = vmatprep.subr.mxu0 0.0
    %573 = vmatpush1.msra.mxu0 0.0
    %574 = vmatprep.subr.mxu0 0.0
    %575 = vmatpush1.msra.mxu0 0.0
    %576 = vmatprep.subr.mxu0 0.0
    %577 = vmatpush1.msra.mxu0 0.0
    %578 = vmatprep.subr.mxu0 0.0
    %579 = vmatpush1.msra.mxu0 0.0
    %580 = vmatprep.subr.mxu0 0.0
    %581 = vmatpush1.msra.mxu0 0.0
    %582 = vmatprep.subr.mxu0 0.0
    %583 = vmatpush1.msra.mxu0 0.0
    %584 = vmatprep.subr.mxu0 0.0
    %585 = vmatpush1.msra.mxu0 0.0
    %586 = vmatprep.subr.mxu0 0.0
    %587 = vmatpush1.msra.mxu0 0.0
    %588 = vmatprep.subr.mxu0 0.0
    %589 = vmatpush1.msra.mxu0 0.0
    %590 = vmatprep.subr.mxu0 0.0
    %591 = vmatpush1.msra.mxu0 0.0
    %592 = vmatprep.subr.mxu0 0.0
    %593 = vmatpush1.msra.mxu0 0.0
    %594 = vmatprep.subr.mxu0 0.0
    %595 = vmatpush1.msra.mxu0 0.0
    %596 = vmatprep.subr.mxu0 0.0
    %597 = vmatpush1.msra.mxu0 0.0
    %598 = vmatprep.subr.mxu0 0.0
    %599 = vmatpush1.msra.mxu0 0.0
    %600 = vmatprep.subr.mxu0 0.0
    %601 = vmatpush1.msra.mxu0 0.0
    %602 = vmatprep.subr.mxu0 0.0
    %603 = vmatpush1.msra.mxu0 0.0
    %604 = vmatprep.subr.mxu0 0.0
    %605 = vmatpush1.msra.mxu0 0.0
    %606 = vmatprep.subr.mxu0 0.0
    %607 = vmatpush1.msra.mxu0 0.0
    %608 = vmatprep.subr.mxu0 0.0
    %609 = vmatpush1.msra.mxu0 0.0
    %610 = vmatprep.subr.mxu0 0.0
    %611 = vmatpush1.msra.mxu0 0.0
    %612 = vmatprep.subr.mxu0 0.0
    %613 = vmatpush1.msra.mxu0 0.0
    %614 = vmatprep.subr.mxu0 0.0
    %615 = vmatpush1.msra.mxu0 0.0
    %616 = vmatprep.subr.mxu0 0.0
    %617 = vmatpush1.msra.mxu0 0.0
    %618 = vmatprep.subr.mxu0 0.0
    %619 = vmatpush1.msra.mxu0 0.0
    %620 = vmatprep.subr.mxu0 0.0
    %621 = vmatpush1.msra.mxu0 0.0
    %622 = vmatprep.subr.mxu0 0.0
    %623 = vmatpush1.msra.mxu0 0.0
    %624 = vmatprep.mubr.f32.mxu0 0.0
    %625 = vmatmul.mubr.f32.gmra.mrb[0].mxu0 %v558
    %v626 = vpop.f32.mrb[0].mxu0
    %v627 = vadd.f32 0.0, %v626
    %v628 = vpop.f32.mrb[0].mxu0
    %629 = vdwg.mxu0
    %v631 = vrot.slane %v627, 6
    %v633 = vadd.f32 %v149, %v631
    %v634 = vtanh.pop %v633
    %s635 = scalar_lea.vmem [#allocation8], 10
    %636 = vst.msk [vmem:[%s635 - $0x2] sm:$0xc] %vm313, %v634
    %v638 = vrot.slane %v634, 2
    %v639 = vsel %vm156, %v638, 0
    %641 = vmatprep.subr.mxu0 0.0
    %642 = vmatpush1.msra.mxu0 %v152
    %643 = vmatprep.subr.mxu0 0.0
    %644 = vmatpush1.msra.mxu0 %v153
    %645 = vmatprep.subr.mxu0 0.0
    %646 = vmatpush1.msra.mxu0 %v154
    %647 = vmatprep.subr.mxu0 0.0
    %648 = vmatpush1.msra.mxu0 %v155
    %649 = vmatprep.subr.mxu0 0.0
    %650 = vmatpush1.msra.mxu0 0.0
    %651 = vmatprep.subr.mxu0 0.0
    %652 = vmatpush1.msra.mxu0 0.0
    %653 = vmatprep.subr.mxu0 0.0
    %654 = vmatpush1.msra.mxu0 0.0
    %655 = vmatprep.subr.mxu0 0.0
    %656 = vmatpush1.msra.mxu0 0.0
    %657 = vmatprep.subr.mxu0 0.0
    %658 = vmatpush1.msra.mxu0 0.0
    %659 = vmatprep.subr.mxu0 0.0
    %660 = vmatpush1.msra.mxu0 0.0
    %661 = vmatprep.subr.mxu0 0.0
    %662 = vmatpush1.msra.mxu0 0.0
    %663 = vmatprep.subr.mxu0 0.0
    %664 = vmatpush1.msra.mxu0 0.0
    %665 = vmatprep.subr.mxu0 0.0
    %666 = vmatpush1.msra.mxu0 0.0
    %667 = vmatprep.subr.mxu0 0.0
    %668 = vmatpush1.msra.mxu0 0.0
    %669 = vmatprep.subr.mxu0 0.0
    %670 = vmatpush1.msra.mxu0 0.0
    %671 = vmatprep.subr.mxu0 0.0
    %672 = vmatpush1.msra.mxu0 0.0
    %673 = vmatprep.subr.mxu0 0.0
    %674 = vmatpush1.msra.mxu0 0.0
    %675 = vmatprep.subr.mxu0 0.0
    %676 = vmatpush1.msra.mxu0 0.0
    %677 = vmatprep.subr.mxu0 0.0
    %678 = vmatpush1.msra.mxu0 0.0
    %679 = vmatprep.subr.mxu0 0.0
    %680 = vmatpush1.msra.mxu0 0.0
    %681 = vmatprep.subr.mxu0 0.0
    %682 = vmatpush1.msra.mxu0 0.0
    %683 = vmatprep.subr.mxu0 0.0
    %684 = vmatpush1.msra.mxu0 0.0
    %685 = vmatprep.subr.mxu0 0.0
    %686 = vmatpush1.msra.mxu0 0.0
    %687 = vmatprep.subr.mxu0 0.0
    %688 = vmatpush1.msra.mxu0 0.0
    %689 = vmatprep.subr.mxu0 0.0
    %690 = vmatpush1.msra.mxu0 0.0
    %691 = vmatprep.subr.mxu0 0.0
    %692 = vmatpush1.msra.mxu0 0.0
    %693 = vmatprep.subr.mxu0 0.0
    %694 = vmatpush1.msra.mxu0 0.0
    %695 = vmatprep.subr.mxu0 0.0
    %696 = vmatpush1.msra.mxu0 0.0
    %697 = vmatprep.subr.mxu0 0.0
    %698 = vmatpush1.msra.mxu0 0.0
    %699 = vmatprep.subr.mxu0 0.0
    %700 = vmatpush1.msra.mxu0 0.0
    %701 = vmatprep.subr.mxu0 0.0
    %702 = vmatpush1.msra.mxu0 0.0
    %703 = vmatprep.subr.mxu0 0.0
    %704 = vmatpush1.msra.mxu0 0.0
    %705 = vmatprep.mubr.f32.mxu0 0.0
    %706 = vmatmul.mubr.f32.gmra.mrb[0].mxu0 %v639
    %v707 = vpop.f32.mrb[0].mxu0
    %v708 = vadd.f32 0.0, %v707
    %v709 = vpop.f32.mrb[0].mxu0
    %710 = vdwg.mxu0
    %v712 = vrot.slane %v708, 4
    %v714 = vadd.f32 %v149, %v712
    %v715 = vtanh.pop %v714
    %s716 = scalar_lea.vmem [#allocation8], 12
    %717 = vst.msk [vmem:[%s716 - $0x4] sm:$0x30] %vm395, %v715
    %v719 = vrot.slane %v715, 4
    %v720 = vsel %vm156, %v719, 0
    %722 = vmatprep.subr.mxu0 0.0
    %723 = vmatpush1.msra.mxu0 %v152
    %724 = vmatprep.subr.mxu0 0.0
    %725 = vmatpush1.msra.mxu0 %v153
    %726 = vmatprep.subr.mxu0 0.0
    %727 = vmatpush1.msra.mxu0 %v154
    %728 = vmatprep.subr.mxu0 0.0
    %729 = vmatpush1.msra.mxu0 %v155
    %730 = vmatprep.subr.mxu0 0.0
    %731 = vmatpush1.msra.mxu0 0.0
    %732 = vmatprep.subr.mxu0 0.0
    %733 = vmatpush1.msra.mxu0 0.0
    %734 = vmatprep.subr.mxu0 0.0
    %735 = vmatpush1.msra.mxu0 0.0
    %736 = vmatprep.subr.mxu0 0.0
    %737 = vmatpush1.msra.mxu0 0.0
    %738 = vmatprep.subr.mxu0 0.0
    %739 = vmatpush1.msra.mxu0 0.0
    %740 = vmatprep.subr.mxu0 0.0
    %741 = vmatpush1.msra.mxu0 0.0
    %742 = vmatprep.subr.mxu0 0.0
    %743 = vmatpush1.msra.mxu0 0.0
    %744 = vmatprep.subr.mxu0 0.0
    %745 = vmatpush1.msra.mxu0 0.0
    %746 = vmatprep.subr.mxu0 0.0
    %747 = vmatpush1.msra.mxu0 0.0
    %748 = vmatprep.subr.mxu0 0.0
    %749 = vmatpush1.msra.mxu0 0.0
    %750 = vmatprep.subr.mxu0 0.0
    %751 = vmatpush1.msra.mxu0 0.0
    %752 = vmatprep.subr.mxu0 0.0
    %753 = vmatpush1.msra.mxu0 0.0
    %754 = vmatprep.subr.mxu0 0.0
    %755 = vmatpush1.msra.mxu0 0.0
    %756 = vmatprep.subr.mxu0 0.0
    %757 = vmatpush1.msra.mxu0 0.0
    %758 = vmatprep.subr.mxu0 0.0
    %759 = vmatpush1.msra.mxu0 0.0
    %760 = vmatprep.subr.mxu0 0.0
    %761 = vmatpush1.msra.mxu0 0.0
    %762 = vmatprep.subr.mxu0 0.0
    %763 = vmatpush1.msra.mxu0 0.0
    %764 = vmatprep.subr.mxu0 0.0
    %765 = vmatpush1.msra.mxu0 0.0
    %766 = vmatprep.subr.mxu0 0.0
    %767 = vmatpush1.msra.mxu0 0.0
    %768 = vmatprep.subr.mxu0 0.0
    %769 = vmatpush1.msra.mxu0 0.0
    %770 = vmatprep.subr.mxu0 0.0
    %771 = vmatpush1.msra.mxu0 0.0
    %772 = vmatprep.subr.mxu0 0.0
    %773 = vmatpush1.msra.mxu0 0.0
    %774 = vmatprep.subr.mxu0 0.0
    %775 = vmatpush1.msra.mxu0 0.0
    %776 = vmatprep.subr.mxu0 0.0
    %777 = vmatpush1.msra.mxu0 0.0
    %778 = vmatprep.subr.mxu0 0.0
    %779 = vmatpush1.msra.mxu0 0.0
    %780 = vmatprep.subr.mxu0 0.0
    %781 = vmatpush1.msra.mxu0 0.0
    %782 = vmatprep.subr.mxu0 0.0
    %783 = vmatpush1.msra.mxu0 0.0
    %784 = vmatprep.subr.mxu0 0.0
    %785 = vmatpush1.msra.mxu0 0.0
    %786 = vmatprep.mubr.f32.mxu0 0.0
    %787 = vmatmul.mubr.f32.gmra.mrb[0].mxu0 %v720
    %v788 = vpop.f32.mrb[0].mxu0
    %v789 = vadd.f32 0.0, %v788
    %v790 = vpop.f32.mrb[0].mxu0
    %791 = vdwg.mxu0
    %v793 = vrot.slane %v789, 2
    %v795 = vadd.f32 %v149, %v793
    %v796 = vtanh.pop %v795
    %s797 = scalar_lea.vmem [#allocation8], 14
    %798 = vst.msk [vmem:[%s797 - $0x6] sm:$0xc0] %vm477, %v796
    // Predicated region
    $region30: #{tpu_custom_call.1} parent=1 // pred_check
      _
    $region31: #{tpu_custom_call.1} parent=1 // pred_check_branch
      %800 = sbr.rel (0) target = $region33
    $region32: #{tpu_custom_call.1} parent=1 // pred_region
      %s802 = ssub.s32 256, 256
      %803 = vsyncadd [#allocation4], %s802
      %s804 = sshll.u32 [#allocation8], 4
      %s805 = int_to_ptr.vmem [resolvable:$true] %s804
      %810 = dma.vmem_to_hbm [thread:$0]  %s805, 256, %s4, [#allocation4], 32, 32, 2
    $region33: #{tpu_custom_call.1} parent=1 // pred_fallthru
      _
    // Predicated region
    $region34: #{tpu_custom_call.1} parent=1 // pred_check
      _
    $region35: #{tpu_custom_call.1} parent=1 // pred_check_branch
      %812 = sbr.rel (0) target = $region37
    $region36: #{tpu_custom_call.1} parent=1 // pred_region
      %813 = dma.done [#allocation4], 256
    $region37: #{tpu_custom_call.1} parent=1 // pred_fallthru
      _
    %814 = vsyncpa [#allocation3], 1
    %815 = vsyncpa [#allocation6], 1
    %816 = vsyncpa [#allocation4], 1

</llo_original>
